<compile_context>
chip_gen: v7x
topology: tpu7x:2x2x1
jax: 0.10.0
libtpu: 0.0.40
codegen_flags: <defaults>
</compile_context>

<pallas_src>
import functools

import jax
import jax.numpy as jnp
from jax.experimental import pallas as pl
from jax.experimental.pallas import tpu as pltpu


def _focal_loss_kernel(x_ref, tgt_ref, cw_ref, out_ref, *, gamma, n_classes, fold):
    x = x_ref[...]        # (fold*C, TB) f32 logits; classes*fold on sublanes, batch on lanes
    tgt = tgt_ref[...]    # (fold, TB) i32 labels, group g pre-offset by g*C
    cw = cw_ref[...]      # (fold, TB) f32 per-example weight (0 for padded columns)

    R, TB = x.shape
    row = jax.lax.broadcasted_iota(jnp.int32, (R, TB), 0)

    # Row r belongs to group g = r // C and class j = r % C.  Targets of group g were
    # offset by g*C in the wrapper, so a simple equality against each group's target
    # row (ORed over groups) gives the one-hot mask with no float cast / gather.
    match = row == tgt[0:1, :]
    for g in range(1, fold):
        match = match | (row == tgt[g : g + 1, :])

    # Per-element class weight: pick the weight row of the group owning this sublane.
    cw_full = cw[0:1, :]
    for g in range(1, fold):
        cw_full = jnp.where(row >= g * n_classes, cw[g : g + 1, :], cw_full)

    # zi = -input, flipped at the target class.
    zi = jnp.where(match, x, -x)

    # Numerically stable log-sigmoid pieces (shared softplus term):
    #   t                = exp(-|zi|)                              (EUP)
    #   log(1 - pis)     = log(sigmoid(-zi)) = -max(zi,0) - log(1+t)  (EUP log)
    #   log(pis)         = zi + log(1 - pis)                       (no -inf)
    t = jnp.exp(-jnp.abs(zi))
    log_1m_p = -jnp.maximum(zi, 0.0) - jnp.log(1.0 + t)
    log_p = zi + log_1m_p

    # (1 - pis)^gamma reuses log(1 - pis); trace-time special cases keep the
    # single-slot EUP off the critical path for the trivial gammas.
    if gamma == 0.0:
        weighted = cw_full * log_p
    elif gamma == 1.0:
        weighted = cw_full * (jnp.exp(log_1m_p) * log_p)
    else:
        weighted = cw_full * (jnp.exp(float(gamma) * log_1m_p) * log_p)

    # One grand sum per tile (padded columns contribute 0 via cw=0);
    # each grid step writes its own partial -> axis can be "parallel".
    part = jnp.sum(weighted, axis=1, keepdims=True)          # (R, 1)
    out_ref[...] = jnp.sum(part, axis=0, keepdims=True)      # (1, 1)


def focal_loss(x, target, weight, gamma=1.0, block_b=131072,
               vmem_limit_bytes=48 * 1024 * 1024):
    """x: (B, C) float logits; target: (B,) int labels; weight: (C,) per-class weight."""
    B, C = x.shape
    LANE = 128

    # Fold several batch groups onto sublanes so the 8-sublane f32 vreg is full
    # (C=4 -> fold=2 -> 8 rows).  Falls back to fold=1 if C doesn't divide 8.
    fold = 8 // C if (0 < C <= 8 and 8 % C == 0) else 1
    rows = fold * C

    x32 = x.astype(jnp.float32)
    tgt = target.astype(jnp.int32)
    # class_weights gather done in the wrapper (trivial XLA gather on a (B,) vector);
    # its zero padding also masks the padded batch columns inside the kernel.
    cw = weight.astype(jnp.float32)[tgt]                      # (B,)

    # Lane length per fold-group, padded to the tile width; tile width capped near B
    # so small inputs don't over-pad.
    half = max(LANE, (-(-(-(-B // fold)) // LANE)) * LANE)    # round_up(ceil(B/fold), 128)
    tb = min(max(1, block_b // fold), half)
    tb = max(LANE, (tb // LANE) * LANE)                       # multiple of 128
    half = (-(-half // tb)) * tb                              # divisible by tile
    b_tot = fold * half

    x_pad = jnp.zeros((b_tot, C), jnp.float32).at[:B].set(x32)
    tgt_pad = jnp.zeros((b_tot,), jnp.int32).at[:B].set(tgt)
    cw_pad = jnp.zeros((b_tot,), jnp.float32).at[:B].set(cw)  # zeros mask padding

    # Lane-dense folded layout: batch -> lanes, (group, class) -> sublanes.
    xt = x_pad.reshape(fold, half, C).transpose(0, 2, 1).reshape(rows, half)
    offs = (jnp.arange(fold, dtype=jnp.int32) * C)[:, None]
    tgt2 = tgt_pad.reshape(fold, half) + offs                 # group-offset targets
    cw2 = cw_pad.reshape(fold, half)

    num_tiles = half // tb
    kernel = functools.partial(_focal_loss_kernel, gamma=float(gamma),
                               n_classes=C, fold=fold)
    partials = pl.pallas_call(
        kernel,
        out_shape=jax.ShapeDtypeStruct((1, num_tiles), jnp.float32),
        grid_spec=pltpu.PrefetchScalarGridSpec(
            num_scalar_prefetch=0,
            grid=(num_tiles,),
            in_specs=[
                pl.BlockSpec((rows, tb), lambda i: (0, i)),
                pl.BlockSpec((fold, tb), lambda i: (0, i)),
                pl.BlockSpec((fold, tb), lambda i: (0, i)),
            ],
            out_specs=pl.BlockSpec((1, 1), lambda i: (0, i)),
        ),
        compiler_params=pltpu.CompilerParams(
            # each tile writes its own partial -> independent, megacore-friendly
            dimension_semantics=("parallel",),
            vmem_limit_bytes=vmem_limit_bytes,
        ),
    )(xt, tgt2, cw2)
    # final reduction + negation over the tiny partials vector in JAX
    return -jnp.sum(partials)


def _focal_loss_ref(x, target, weight, gamma=1.0):
    """Pure-JAX reference mirroring the PyTorch module."""
    C = x.shape[1]
    onehot = jax.nn.one_hot(target, C, dtype=jnp.float32)
    zi = x * (2.0 * onehot - 1.0)
    pis = jax.nn.sigmoid(zi)
    multipled = jnp.sum((1.0 - pis) ** gamma * jnp.log(pis), axis=1)
    class_weights = weight[target].astype(jnp.float32)
    return -jnp.dot(class_weights, multipled)


if __name__ == "__main__":
    key = jax.random.PRNGKey(0)
    k1, k2, k3 = jax.random.split(key, 3)

    B, C = 8, 4          # small batch of logits over 4 stance classes

    x = jax.random.normal(k1, (B, C), dtype=jnp.float32)
    target = jax.random.randint(k2, (B,), 0, C, dtype=jnp.int32)
    # deterministic "module parameter": per-class weight vector (shape (C,))
    weight = jax.random.uniform(k3, (C,), dtype=jnp.float32) + 0.5

    # exercise gamma=1, gamma=2, general-gamma, and gamma=0 paths
    for gamma in (1.0, 2.0, 0.5, 0.0):
        loss = jax.block_until_ready(focal_loss(x, target, weight, gamma=gamma))
        ref = _focal_loss_ref(x, target, weight, gamma=gamma)
        assert jnp.allclose(loss, ref, rtol=1e-5, atol=1e-5), (gamma, loss, ref)

    # multi-tile / odd-batch path (small block to force several grid steps)
    B2 = 1000
    k4, k5 = jax.random.split(k1)
    x2 = jax.random.normal(k4, (B2, C), dtype=jnp.float32)
    t2 = jax.random.randint(k5, (B2,), 0, C, dtype=jnp.int32)
    loss2 = jax.block_until_ready(focal_loss(x2, t2, weight, gamma=2.0, block_b=256))
    ref2 = _focal_loss_ref(x2, t2, weight, gamma=2.0)
    assert jnp.allclose(loss2, ref2, rtol=1e-4, atol=1e-2), (loss2, ref2)

    print("KERNEL_OK")
</pallas_src>

<mosaic_0001>
module attributes {stable_mosaic.version = 11 : i64} {
  func.func @_focal_loss_kernel(%arg0: i32, %arg1: memref<8x128xf32, #tpu.memory_space<vmem>>, %arg2: memref<2x128xi32, #tpu.memory_space<vmem>>, %arg3: memref<2x128xf32, #tpu.memory_space<vmem>>, %arg4: memref<1x1xf32, #tpu.memory_space<vmem>>) attributes {dimension_semantics = [#tpu.dimension_semantics<parallel>], iteration_bounds = array<i64: 1>, scalar_prefetch = 0 : i64, scratch_operands = 0 : i64, tpu.core_type = #tpu.core_type<tc>, window_params = [{transform_indices = @transform_0, window_bounds = array<i64: 8, 128>}, {transform_indices = @transform_1, window_bounds = array<i64: 2, 128>}, {transform_indices = @transform_2, window_bounds = array<i64: 2, 128>}, {transform_indices = @transform_3, window_bounds = array<i64: 1, 1>}]} {
    %c0 = arith.constant 0 : index
    %c0_0 = arith.constant 0 : index
    %0 = vector.load %arg1[%c0, %c0_0] : memref<8x128xf32, #tpu.memory_space<vmem>>, vector<8x128xf32>
    %c0_1 = arith.constant 0 : index
    %c0_2 = arith.constant 0 : index
    %1 = vector.load %arg2[%c0_1, %c0_2] : memref<2x128xi32, #tpu.memory_space<vmem>>, vector<2x128xi32>
    %c0_3 = arith.constant 0 : index
    %c0_4 = arith.constant 0 : index
    %2 = vector.load %arg3[%c0_3, %c0_4] : memref<2x128xf32, #tpu.memory_space<vmem>>, vector<2x128xf32>
    %3 = tpu.iota {dimensions = array<i32: 0>} : vector<8x128xi32>
    %4 = vector.extract_strided_slice %1 {offsets = [0, 0], sizes = [1, 128], strides = [1, 1]} : vector<2x128xi32> to vector<1x128xi32>
    %5 = vector.broadcast %4 : vector<1x128xi32> to vector<8x128xi32>
    %6 = arith.cmpi eq, %3, %5 : vector<8x128xi32>
    %7 = vector.extract_strided_slice %1 {offsets = [1, 0], sizes = [1, 128], strides = [1, 1]} : vector<2x128xi32> to vector<1x128xi32>
    %8 = vector.broadcast %7 : vector<1x128xi32> to vector<8x128xi32>
    %9 = arith.cmpi eq, %3, %8 : vector<8x128xi32>
    %10 = arith.ori %6, %9 : vector<8x128xi1>
    %11 = vector.extract_strided_slice %2 {offsets = [0, 0], sizes = [1, 128], strides = [1, 1]} : vector<2x128xf32> to vector<1x128xf32>
    %c4_i32 = arith.constant 4 : i32
    %12 = vector.broadcast %c4_i32 : i32 to vector<8x128xi32>
    %13 = arith.cmpi sge, %3, %12 : vector<8x128xi32>
    %14 = vector.extract_strided_slice %2 {offsets = [1, 0], sizes = [1, 128], strides = [1, 1]} : vector<2x128xf32> to vector<1x128xf32>
    %15 = vector.shape_cast %14 : vector<1x128xf32> to vector<1x128xf32>
    %16 = vector.broadcast %15 : vector<1x128xf32> to vector<8x128xf32>
    %17 = vector.shape_cast %11 : vector<1x128xf32> to vector<1x128xf32>
    %18 = vector.broadcast %17 : vector<1x128xf32> to vector<8x128xf32>
    %19 = arith.select %13, %16, %18 : vector<8x128xi1>, vector<8x128xf32>
    %cst = arith.constant 0.000000e+00 : f32
    %20 = vector.broadcast %cst : f32 to vector<8x128xf32>
    %21 = arith.subf %20, %0 : vector<8x128xf32>
    %22 = arith.select %10, %0, %21 : vector<8x128xi1>, vector<8x128xf32>
    %23 = math.absf %22 : vector<8x128xf32>
    %cst_5 = arith.constant 0.000000e+00 : f32
    %24 = vector.broadcast %cst_5 : f32 to vector<8x128xf32>
    %25 = arith.subf %24, %23 : vector<8x128xf32>
    %26 = math.exp %25 : vector<8x128xf32>
    %cst_6 = arith.constant 0.000000e+00 : f32
    %27 = vector.broadcast %cst_6 : f32 to vector<8x128xf32>
    %28 = arith.maximumf %22, %27 : vector<8x128xf32>
    %cst_7 = arith.constant 0.000000e+00 : f32
    %29 = vector.broadcast %cst_7 : f32 to vector<8x128xf32>
    %30 = arith.subf %29, %28 : vector<8x128xf32>
    %cst_8 = arith.constant 1.000000e+00 : f32
    %31 = vector.broadcast %cst_8 : f32 to vector<8x128xf32>
    %32 = arith.addf %31, %26 : vector<8x128xf32>
    %33 = math.log %32 : vector<8x128xf32>
    %34 = arith.subf %30, %33 : vector<8x128xf32>
    %35 = arith.addf %22, %34 : vector<8x128xf32>
    %36 = math.exp %34 : vector<8x128xf32>
    %37 = arith.mulf %36, %35 : vector<8x128xf32>
    %38 = arith.mulf %19, %37 : vector<8x128xf32>
    %cst_9 = arith.constant dense<0.000000e+00> : vector<8xf32>
    %39 = vector.multi_reduction <add>, %38, %cst_9 [1] : vector<8x128xf32> to vector<8xf32>
    %40 = vector.shape_cast %39 : vector<8xf32> to vector<8x1xf32>
    %cst_10 = arith.constant dense<0.000000e+00> : vector<1xf32>
    %41 = vector.multi_reduction <add>, %40, %cst_10 [0] : vector<8x1xf32> to vector<1xf32>
    %42 = vector.shape_cast %41 : vector<1xf32> to vector<1x1xf32>
    %c0_11 = arith.constant 0 : index
    %c0_12 = arith.constant 0 : index
    %43 = vector.load %arg4[%c0_11, %c0_12] : memref<1x1xf32, #tpu.memory_space<vmem>>, vector<1x1xf32>
    tpu.vector_store %arg4[%c0_11, %c0_12], %42 {strides = array<i32>} : memref<1x1xf32, #tpu.memory_space<vmem>>, vector<1x1xf32>,
    return
  }
  func.func @transform_0(%arg0: i32) -> (i32, i32) {
    %c0_i32 = arith.constant 0 : i32
    %c0_i32_0 = arith.constant 0 : i32
    return %c0_i32, %arg0 : i32, i32
  }
  func.func @transform_1(%arg0: i32) -> (i32, i32) {
    %c0_i32 = arith.constant 0 : i32
    %c0_i32_0 = arith.constant 0 : i32
    return %c0_i32, %arg0 : i32, i32
  }
  func.func @transform_2(%arg0: i32) -> (i32, i32) {
    %c0_i32 = arith.constant 0 : i32
    %c0_i32_0 = arith.constant 0 : i32
    return %c0_i32, %arg0 : i32, i32
  }
  func.func @transform_3(%arg0: i32) -> (i32, i32) {
    %c0_i32 = arith.constant 0 : i32
    %c0_i32_0 = arith.constant 0 : i32
    return %c0_i32, %arg0 : i32, i32
  }
}

</mosaic_0001>

<llo_original>
// kernel: tpu_custom_call.1
$region0: #{tpu_custom_call.1}
  #allocation0 [shape = 'u32[]', space=smem, size = 0x4, offset = 0x4, fixed_abs, tag = 'smem constant byte address 0x4 - core index']
  #allocation1 [shape = 'u32[144,128]{1,0:T(1,128)}', space=vmem, size = 0x12000, scoped, tag = 'internal scratch']
  %s0 = inlined_call_operand.hbm [shape: f32[8,128], index: 0, kind: input, shape index: {}]
  %s1 = inlined_call_operand.vmem [shape: s32[2,128], index: 1, kind: input, shape index: {}]
  %s2 = inlined_call_operand.vmem [shape: f32[2,128], index: 2, kind: input, shape index: {}]
  %s3 = inlined_call_operand.hbm [shape: f32[1,1], index: 3, kind: output, shape index: {}]
  %s4 = sld [smem:[#allocation0]]
  $region26: #{tpu_custom_call.1} parent=0
    _
  %s6 = ssub.s32 1, %s4
  %s7 = scalar_select 0, %s6, %s4
  $region1: #{tpu_custom_call.1} parent=0
    #allocation2 [shape = 'u8[4096]{0}', space=vmem, size = 0x1000, scoped, tag = 'input window, operand 0, single buffered']
    #allocation3 [shape = 's32[1]{0}', space=sflag, size = 0x4, scoped, tag = 'scoped memory for tpu_custom_call.1']
    #allocation4 [shape = 's32[1]{0}', space=sflag, size = 0x4, scoped, tag = 'scoped memory for tpu_custom_call.1']
    #allocation5 [shape = 'u8[512]{0}', space=vmem, size = 0x400, scoped, tag = 'output window, operand 0, single buffered']
    %8 = vsyncpa [#allocation3], 0
    %9 = vsyncpa [#allocation4], 0
    // Predicated region
    $region2: #{tpu_custom_call.1} parent=1 // pred_check
      _
    $region3: #{tpu_custom_call.1} parent=1 // pred_check_branch
      %11 = sbr.rel (0) target = $region5
    $region4: #{tpu_custom_call.1} parent=1 // pred_region
      %s13 = ssub.s32 128, 128
      %14 = vsyncadd [#allocation3], %s13
      %s16 = sshll.u32 [#allocation2], 4
      %s17 = int_to_ptr.vmem [resolvable:$true] %s16
      %19 = dma.hbm_to_vmem [thread:$0]  %s0, 128, %s17, [#allocation3]
    $region5: #{tpu_custom_call.1} parent=1 // pred_fallthru
      _
    // Predicated region
    $region6: #{tpu_custom_call.1} parent=1 // pred_check
      _
    $region7: #{tpu_custom_call.1} parent=1 // pred_check_branch
      %21 = sbr.rel (0) target = $region9
    $region8: #{tpu_custom_call.1} parent=1 // pred_region
      _
    $region9: #{tpu_custom_call.1} parent=1 // pred_fallthru
      _
    // Predicated region
    $region10: #{tpu_custom_call.1} parent=1 // pred_check
      _
    $region11: #{tpu_custom_call.1} parent=1 // pred_check_branch
      %23 = sbr.rel (0) target = $region13
    $region12: #{tpu_custom_call.1} parent=1 // pred_region
      _
    $region13: #{tpu_custom_call.1} parent=1 // pred_fallthru
      _
    // Predicated region
    $region14: #{tpu_custom_call.1} parent=1 // pred_check
      _
    $region15: #{tpu_custom_call.1} parent=1 // pred_check_branch
      %25 = sbr.rel (0) target = $region17
    $region16: #{tpu_custom_call.1} parent=1 // pred_region
      %26 = dma.done [#allocation3], 128
    $region17: #{tpu_custom_call.1} parent=1 // pred_fallthru
      _
    %v27 = vld [vmem:[#allocation2] sm:$0xff]
    %v28 = vld [vmem:[%s1] sm:$0x3]
    %v29 = vld [vmem:[%s2] sm:$0x3]
    %v30 = vlaneseq
    %v31 = vshrl.u32 %v30, 7
    %v32 = vlaneseq
    %v33 = vshrl.u32 %v32, 7
    %v34 = vsub.s32 0, %v33
    %v35 = vrot.slane %v28, %v34
    %vm36 = vcmp.eq.s32.totalorder %v31, %v35
    %v37 = vlaneseq
    %v38 = vshrl.u32 %v37, 7
    %v39 = vsub.s32 1, %v38
    %v40 = vrot.slane %v28, %v39
    %vm41 = vcmp.eq.s32.totalorder %v31, %v40
    %vm42 = vmor %vm36, %vm41
    %vm43 = vcmp.ge.s32.totalorder %v31, 4
    %v44 = vlaneseq
    %v45 = vshrl.u32 %v44, 7
    %v46 = vsub.s32 1, %v45
    %v47 = vrot.slane %v29, %v46
    %v48 = vlaneseq
    %v49 = vshrl.u32 %v48, 7
    %v50 = vsub.s32 0, %v49
    %v51 = vrot.slane %v29, %v50
    %v52 = vsel %vm43, %v47, %v51
    %v53 = vsub.f32 0.0, %v27
    %v54 = vsel %vm42, %v27, %v53
    %v55 = vand.u32 2147483647, %v54
    %v56 = vsub.f32 0.0, %v55
    %v57 = vmul.f32 %v56, 1.442695
    %v58 = vpow.pop %v57
    %v59 = vmax.f32 %v54, 0.0
    %v60 = vsub.f32 0.0, %v59
    %v61 = vadd.f32 %v58, 1.0
    %v62 = vlog2.pop %v61
    %v63 = vmul.f32 %v62, 0.6931472
    %v64 = vsub.f32 %v60, %v63
    %v65 = vadd.f32 %v54, %v64
    %v66 = vmul.f32 %v64, 1.442695
    %v67 = vpow.pop %v66
    %v68 = vmul.f32 %v67, %v65
    %v69 = vmul.f32 %v52, %v68
    %70 = vadd.xlane.f32.xlu0 %v69
    %v71 = vpop.xlane.xlu0 %70
    %v72 = vrot.slane %v71, 4
    %v73 = vadd.f32 %v71, %v72
    %v74 = vrot.slane %v73, 2
    %v75 = vadd.f32 %v73, %v74
    %v76 = vrot.slane %v75, 1
    %v77 = vadd.f32 %v75, %v76
    %vm78 = vcmask 0
    %79 = vst.msk [vmem:[#allocation5] sm:$0x1] %vm78, %v77
    // Predicated region
    $region18: #{tpu_custom_call.1} parent=1 // pred_check
      _
    $region19: #{tpu_custom_call.1} parent=1 // pred_check_branch
      %81 = sbr.rel (0) target = $region21
    $region20: #{tpu_custom_call.1} parent=1 // pred_region
      %s83 = ssub.s32 16, 16
      %84 = vsyncadd [#allocation4], %s83
      %s86 = sshll.u32 [#allocation5], 4
      %s87 = int_to_ptr.vmem [resolvable:$true] %s86
      %89 = dma.vmem_to_hbm [thread:$0]  %s87, 16, %s3, [#allocation4]
    $region21: #{tpu_custom_call.1} parent=1 // pred_fallthru
      _
    // Predicated region
    $region22: #{tpu_custom_call.1} parent=1 // pred_check
      _
    $region23: #{tpu_custom_call.1} parent=1 // pred_check_branch
      %91 = sbr.rel (0) target = $region25
    $region24: #{tpu_custom_call.1} parent=1 // pred_region
      %92 = dma.done [#allocation4], 16
    $region25: #{tpu_custom_call.1} parent=1 // pred_fallthru
      _
    %93 = vsyncpa [#allocation3], 1
    %94 = vsyncpa [#allocation4], 1

</llo_original>
